<compile_context>
chip_gen: v5e
topology: v5e:2x2
jax: 0.10.0
libtpu: 0.0.40
codegen_flags: <defaults>
</compile_context>

<pallas_src>
import numpy as np
import jax
import jax.numpy as jnp
from jax.experimental import pallas as pl
from jax.experimental.pallas import tpu as pltpu


def creat_real_dictionary(T, rr, theta):
    """Normalized dictionary, shape (T, 1 + 4*N). rr must be > 0 (as in the module)."""
    i = jnp.arange(T, dtype=jnp.float32)[:, None]            # (T, 1)
    rr_ = rr[None, :].astype(jnp.float32)                     # (1, N)
    th = theta[None, :].astype(jnp.float32)                   # (1, N)
    pow_rr = rr_ ** i                                          # rr^i        (T, N)
    # (-rr)^i == (-1)^i * rr^i  for rr > 0 and integer i
    sign = jnp.where(jnp.mod(i, 2.0) == 0.0, 1.0, -1.0)        # (T, 1)
    cosv = jnp.cos(i * th)
    sinv = jnp.sin(i * th)
    W1 = pow_rr * cosv
    W2 = sign * pow_rr * cosv
    W3 = pow_rr * sinv
    W4 = sign * pow_rr * sinv
    ones = jnp.ones((T, 1), jnp.float32)
    dic = jnp.concatenate([ones, W1, W2, W3, W4], axis=1)      # (T, 1+4N)
    # Column-wise L2 normalization (G[G==0] = sqrt(T)), hoisted out of the kernel.
    g = jnp.linalg.norm(dic, axis=0)
    g = jnp.where(g == 0.0, jnp.sqrt(jnp.float32(T)), g)
    return dic / g[None, :]


def decoder_matmul_kernel(dic_ref, x_ref, o_ref):
    # dic_ref: (Ttot, K)     normalized dictionary, resident across grid steps
    # x_ref:   (K, tile_n)   one 128-aligned column tile of the flattened batch
    # o_ref:   (Ttot, tile_n)
    o_ref[...] = jnp.dot(
        dic_ref[...], x_ref[...], preferred_element_type=jnp.float32
    ).astype(o_ref.dtype)


def _round_up(a, b):
    return (a + b - 1) // b * b


def decoder_forward(rr, theta, x, T, PRE, *, tile_n=512, compute_dtype=jnp.float32):
    """x: (B, 4N+1, F) float32 -> (B, T+PRE, F) float32."""
    Ttot = T + PRE
    B, K, F = x.shape
    assert K == 1 + 4 * rr.shape[0]

    # Dictionary built + normalized once (parameter-only work, outside the kernel).
    dic = creat_real_dictionary(Ttot, rr, theta)               # (Ttot, K) f32

    # Fold the batch into a lane-dense column axis: (B, K, F) -> (K, B*F).
    n_cols = B * F
    x2d = jnp.transpose(x, (1, 0, 2)).reshape(K, n_cols)

    # 128-aligned lane tiles; clamp the tile for small problems, pad columns with zeros.
    tile_n = min(tile_n, _round_up(n_cols, 128))
    n_pad = _round_up(n_cols, tile_n)
    if n_pad != n_cols:
        x2d = jnp.pad(x2d, ((0, 0), (0, n_pad - n_cols)))

    # Optional low-precision inputs (f32 accumulation on the MXU).
    dic_in = dic.astype(compute_dtype)
    x_in = x2d.astype(compute_dtype)

    grid = (n_pad // tile_n,)
    itemsize = jnp.dtype(compute_dtype).itemsize
    out2d = pl.pallas_call(
        decoder_matmul_kernel,
        out_shape=jax.ShapeDtypeStruct((Ttot, n_pad), jnp.float32),
        grid=grid,
        in_specs=[
            # small dictionary tile, same block every grid step (stays resident)
            pl.BlockSpec((Ttot, K), lambda j: (0, 0)),
            # lane-dense column tile of the flattened batch
            pl.BlockSpec((K, tile_n), lambda j: (0, j)),
        ],
        out_specs=pl.BlockSpec((Ttot, tile_n), lambda j: (0, j)),
        compiler_params=pltpu.CompilerParams(
            dimension_semantics=("parallel",),
        ),
        cost_estimate=pl.CostEstimate(
            flops=2 * Ttot * K * n_pad,
            transcendentals=0,
            bytes_accessed=itemsize * (Ttot * K + K * n_pad) + 4 * Ttot * n_pad,
        ),
    )(dic_in, x_in)

    # Drop padding columns and restore (B, Ttot, F).
    out = out2d[:, :n_cols].reshape(Ttot, B, F)
    return jnp.transpose(out, (1, 0, 2))


def _reference(rr, theta, x, T, PRE):
    dic = creat_real_dictionary(T + PRE, rr, theta)
    return jnp.einsum("tk,bkf->btf", dic, x)


if __name__ == "__main__":
    key = jax.random.PRNGKey(0)

    # Case 1: small shapes consistent with the module (single lane tile, grid=(1,)).
    B, N, T, PRE, F = 2, 8, 8, 4, 16
    K = 4 * N + 1
    k_rr, k_th, k_x, k_x2 = jax.random.split(key, 4)
    rr = jax.random.uniform(k_rr, (N,), jnp.float32, minval=0.9, maxval=1.1)
    theta = jax.random.uniform(k_th, (N,), jnp.float32, minval=0.0, maxval=np.pi)
    x = jax.random.normal(k_x, (B, K, F), jnp.float32)

    out = jax.block_until_ready(decoder_forward(rr, theta, x, T, PRE))
    ref = _reference(rr, theta, x, T, PRE)
    assert out.shape == (B, T + PRE, F)
    np.testing.assert_allclose(np.asarray(out), np.asarray(ref), rtol=1e-4, atol=1e-4)

    # Case 2: larger folded column axis to exercise multi-tile grid (B*F = 1024 -> 2 tiles).
    B2, F2 = 4, 256
    x2 = jax.random.normal(k_x2, (B2, K, F2), jnp.float32)
    out2 = jax.block_until_ready(decoder_forward(rr, theta, x2, T, PRE))
    ref2 = _reference(rr, theta, x2, T, PRE)
    assert out2.shape == (B2, T + PRE, F2)
    np.testing.assert_allclose(np.asarray(out2), np.asarray(ref2), rtol=1e-4, atol=1e-4)

    print("KERNEL_OK")
</pallas_src>

<mosaic_0001>
module attributes {stable_mosaic.version = 11 : i64} {
  func.func @decoder_matmul_kernel(%arg0: i32, %arg1: memref<12x33xf32, #tpu.memory_space<vmem>>, %arg2: memref<33x128xf32, #tpu.memory_space<vmem>>, %arg3: memref<12x128xf32, #tpu.memory_space<vmem>>) attributes {dimension_semantics = [#tpu.dimension_semantics<parallel>], iteration_bounds = array<i64: 1>, scalar_prefetch = 0 : i64, scratch_operands = 0 : i64, tpu.core_type = #tpu.core_type<tc>, window_params = [{pipeline_mode = #tpu.pipeline_mode<synchronous>, transform_indices = @transform_0, window_bounds = array<i64: 12, 33>}, {transform_indices = @transform_1, window_bounds = array<i64: 33, 128>}, {transform_indices = @transform_2, window_bounds = array<i64: 12, 128>}]} {
    %c0 = arith.constant 0 : index
    %c0_0 = arith.constant 0 : index
    %0 = vector.load %arg1[%c0, %c0_0] : memref<12x33xf32, #tpu.memory_space<vmem>>, vector<12x33xf32>
    %c0_1 = arith.constant 0 : index
    %c0_2 = arith.constant 0 : index
    %1 = vector.load %arg2[%c0_1, %c0_2] : memref<33x128xf32, #tpu.memory_space<vmem>>, vector<33x128xf32>
    %cst = arith.constant dense<0.000000e+00> : vector<12x128xf32>
    %2 = tpu.matmul %0, %1, %cst {dimension_numbers = #tpu.dot_dimension_numbers<[1], [0], [0], [1], [0, 0, 1, 1], [], []>} : vector<12x33xf32>, vector<33x128xf32>, vector<12x128xf32> -> vector<12x128xf32>
    %c0_3 = arith.constant 0 : index
    %c0_4 = arith.constant 0 : index
    %3 = vector.load %arg3[%c0_3, %c0_4] : memref<12x128xf32, #tpu.memory_space<vmem>>, vector<12x128xf32>
    tpu.vector_store %arg3[%c0_3, %c0_4], %2 {strides = array<i32>} : memref<12x128xf32, #tpu.memory_space<vmem>>, vector<12x128xf32>,
    return
  }
  func.func @transform_0(%arg0: i32) -> (i32, i32) {
    %c0_i32 = arith.constant 0 : i32
    %c0_i32_0 = arith.constant 0 : i32
    %c0_i32_1 = arith.constant 0 : i32
    return %c0_i32, %c0_i32_0 : i32, i32
  }
  func.func @transform_1(%arg0: i32) -> (i32, i32) {
    %c0_i32 = arith.constant 0 : i32
    %c0_i32_0 = arith.constant 0 : i32
    return %c0_i32, %arg0 : i32, i32
  }
  func.func @transform_2(%arg0: i32) -> (i32, i32) {
    %c0_i32 = arith.constant 0 : i32
    %c0_i32_0 = arith.constant 0 : i32
    return %c0_i32, %arg0 : i32, i32
  }
}

</mosaic_0001>

<llo_original>
// kernel: tpu_custom_call.1
$region0: #{tpu_custom_call.1}
  #allocation0 [shape = 'u32[]', space=smem, size = 0x4, offset = 0x4, fixed_abs, tag = 'smem constant byte address 0x4 - core index']
  #allocation1 [shape = 'u32[72,128]{1,0:T(1,128)}', space=vmem, size = 0x9000, scoped, tag = 'internal scratch']
  %s0 = inlined_call_operand.hbm [shape: f32[12,33], index: 0, kind: input, shape index: {}]
  %s1 = inlined_call_operand.hbm [shape: f32[33,128], index: 1, kind: input, shape index: {}]
  %s2 = inlined_call_operand.hbm [shape: f32[12,128], index: 2, kind: output, shape index: {}]
  %s3 = sld [smem:[#allocation0]]
  $region26: #{tpu_custom_call.1} parent=0
    _
  %s5 = ssub.s32 1, %s3
  %s6 = scalar_select 0, %s5, %s3
  $region1: #{tpu_custom_call.1} parent=0
    #allocation2 [shape = 'u8[8192]{0}', space=vmem, size = 0x2000, scoped, tag = 'input window, operand 0, single buffered']
    #allocation3 [shape = 's32[1]{0}', space=sflag, size = 0x4, scoped, tag = 'scoped memory for tpu_custom_call.1']
    #allocation4 [shape = 's32[1]{0}', space=sflag, size = 0x4, scoped, tag = 'scoped memory for tpu_custom_call.1']
    #allocation5 [shape = 'u8[20480]{0}', space=vmem, size = 0x5000, scoped, tag = 'input window, operand 1, single buffered']
    #allocation6 [shape = 's32[1]{0}', space=sflag, size = 0x4, scoped, tag = 'scoped memory for tpu_custom_call.1']
    #allocation7 [shape = 'u8[8192]{0}', space=vmem, size = 0x2000, scoped, tag = 'output window, operand 0, single buffered']
    %7 = vsyncpa [#allocation3], 0
    %8 = vsyncpa [#allocation6], 0
    %9 = vsyncpa [#allocation4], 0
    // Predicated region
    $region2: #{tpu_custom_call.1} parent=1 // pred_check
      _
    $region3: #{tpu_custom_call.1} parent=1 // pred_check_branch
      %11 = sbr.rel (0) target = $region5
    $region4: #{tpu_custom_call.1} parent=1 // pred_region
      %13 = vsyncadd [#allocation3], 0
      %s14 = sshll.u32 %s0, 4
      %s15 = int_to_ptr.hbm [resolvable:$true] %s14
      %s16 = sshll.u32 [#allocation2], 4
      %s17 = int_to_ptr.vmem [resolvable:$true] %s16
      %22 = dma.hbm_to_vmem [thread:$0]  %s15, 256, %s17, [#allocation3], 128, 128, 8
    $region5: #{tpu_custom_call.1} parent=1 // pred_fallthru
      _
    // Predicated region
    $region6: #{tpu_custom_call.1} parent=1 // pred_check
      _
    $region7: #{tpu_custom_call.1} parent=1 // pred_check_branch
      %24 = sbr.rel (0) target = $region9
    $region8: #{tpu_custom_call.1} parent=1 // pred_region
      %26 = vsyncadd [#allocation6], 0
      %s27 = sshll.u32 %s1, 4
      %s28 = int_to_ptr.hbm [resolvable:$true] %s27
      %s29 = sshll.u32 [#allocation5], 4
      %s30 = int_to_ptr.vmem [resolvable:$true] %s29
      %35 = dma.hbm_to_vmem [thread:$0]  %s28, 640, %s30, [#allocation6], 128, 128, 8
    $region9: #{tpu_custom_call.1} parent=1 // pred_fallthru
      _
    // Predicated region
    $region10: #{tpu_custom_call.1} parent=1 // pred_check
      _
    $region11: #{tpu_custom_call.1} parent=1 // pred_check_branch
      %37 = sbr.rel (0) target = $region13
    $region12: #{tpu_custom_call.1} parent=1 // pred_region
      %39 = dma.done [#allocation3], 256
    $region13: #{tpu_custom_call.1} parent=1 // pred_fallthru
      _
    // Predicated region
    $region14: #{tpu_custom_call.1} parent=1 // pred_check
      _
    $region15: #{tpu_custom_call.1} parent=1 // pred_check_branch
      %41 = sbr.rel (0) target = $region17
    $region16: #{tpu_custom_call.1} parent=1 // pred_region
      %43 = dma.done [#allocation6], 640
    $region17: #{tpu_custom_call.1} parent=1 // pred_fallthru
      _
    %v44 = vld [vmem:[#allocation2] sm:$0xff]
    %v45 = vld [vmem:[#allocation2 + $0x8] sm:$0xf]
    %v46 = vld [vmem:[#allocation5] sm:$0xff]
    %v47 = vld [vmem:[#allocation5 + $0x8] sm:$0xff]
    %v48 = vld [vmem:[#allocation5 + $0x10] sm:$0xff]
    %v49 = vld [vmem:[#allocation5 + $0x18] sm:$0xff]
    %v50 = vld [vmem:[#allocation5 + $0x20] sm:$0x1]
    %vm51 = vcmask 269312
    %v53 = vsel %vm51, %v44, 0
    %v56 = vsel %vm51, %v45, 0
    %vm58 = vcmask 1040384
    %v60 = vsel %vm58, %v50, 0
    %62 = vmatpush.msra.mxu0 0.0
    %63 = vmatpush.msra.mxu0 0.0
    %64 = vmatpush.msra.mxu0 0.0
    %65 = vmatpush.msra.mxu0 0.0
    %66 = vmatpush.msra.mxu0 0.0
    %67 = vmatpush.msra.mxu0 0.0
    %68 = vmatpush.msra.mxu0 0.0
    %69 = vmatpush.msra.mxu0 0.0
    %70 = vmatpush.msra.mxu0 0.0
    %71 = vmatpush.msra.mxu0 0.0
    %72 = vmatpush.msra.mxu0 0.0
    %73 = vmatpush.msra.mxu0 %v60
    %74 = vmatpush.msra.mxu0 %v49
    %75 = vmatpush.msra.mxu0 %v48
    %76 = vmatpush.msra.mxu0 %v47
    %77 = vmatpush.msra.mxu0 %v46
    %78 = vmatmul.f32.gmra.mxu0 %v53
    %v79 = vpop.f32.mrf.mxu0
    %v80 = vadd.f32 0.0, %v79
    %81 = vmatmul.f32.gmra.mxu0 %v56
    %v82 = vpop.f32.mrf.mxu0
    %v83 = vadd.f32 0.0, %v82
    %84 = vdwg.mxu0
    %85 = vst [vmem:[#allocation7] sm:$0xff] %v80
    %86 = vst [vmem:[#allocation7 + $0x8] sm:$0xf] %v83
    // Predicated region
    $region18: #{tpu_custom_call.1} parent=1 // pred_check
      _
    $region19: #{tpu_custom_call.1} parent=1 // pred_check_branch
      %88 = sbr.rel (0) target = $region21
    $region20: #{tpu_custom_call.1} parent=1 // pred_region
      %90 = vsyncadd [#allocation4], 0
      %s91 = sshll.u32 [#allocation7], 4
      %s92 = int_to_ptr.vmem [resolvable:$true] %s91
      %s93 = sshll.u32 %s2, 4
      %s94 = int_to_ptr.hbm [resolvable:$true] %s93
      %99 = dma.vmem_to_hbm [thread:$0]  %s92, 256, %s94, [#allocation4], 128, 128, 8
    $region21: #{tpu_custom_call.1} parent=1 // pred_fallthru
      _
    // Predicated region
    $region22: #{tpu_custom_call.1} parent=1 // pred_check
      _
    $region23: #{tpu_custom_call.1} parent=1 // pred_check_branch
      %101 = sbr.rel (0) target = $region25
    $region24: #{tpu_custom_call.1} parent=1 // pred_region
      %103 = dma.done [#allocation4], 256
    $region25: #{tpu_custom_call.1} parent=1 // pred_fallthru
      _
    %104 = vsyncpa [#allocation3], 1
    %105 = vsyncpa [#allocation6], 1
    %106 = vsyncpa [#allocation4], 1

</llo_original>
